<compile_context>
chip_gen: v5e
topology: v5e:2x2
jax: 0.10.0
libtpu: 0.0.40
codegen_flags: <defaults>
</compile_context>

<pallas_src>
import math

import jax
import jax.numpy as jnp
from jax.experimental import pallas as pl
from jax.experimental.pallas import tpu as pltpu

_GELU_C = math.sqrt(2.0 / math.pi)


def _gelu_tanh(h):
    # 0.5*h*(1+tanh(c*(h+0.044715*h^3)))  ==  h*(0.5+0.5*tanh(c*h*(1+0.044715*h^2)))
    return h * (0.5 + 0.5 * jnp.tanh(_GELU_C * h * (1.0 + 0.044715 * (h * h))))


# ---------------------------------------------------------------------------
# Kernels
# ---------------------------------------------------------------------------
def _ffn_resident_kernel(x_ref, w1_ref, b1_ref, w2_ref, b2_ref, o_ref):
    # Weights resident in VMEM; one token tile per grid step, no reduction axis.
    h = jnp.dot(x_ref[...], w1_ref[...], preferred_element_type=jnp.float32)
    h = _gelu_tanh(h + b1_ref[...].astype(jnp.float32))
    out = jnp.dot(h.astype(w2_ref.dtype), w2_ref[...],
                  preferred_element_type=jnp.float32)
    o_ref[...] = (out + b2_ref[...].astype(jnp.float32)).astype(o_ref.dtype)


def _ffn_tiled_kernel(x_ref, w1_ref, b1_ref, w2_ref, b2_ref, o_ref, acc_ref):
    # x: (TN, E)  w1: (E, TH)  b1: (1, TH)  w2: (TH, E)  b2: (1, E)
    # acc: (TN, E) f32 scratch resident across the hidden (reduction) axis.
    h_step = pl.program_id(1)

    @pl.when(h_step == 0)
    def _init():
        # Fold b2 into the accumulator init instead of adding it in finalize.
        acc_ref[...] = jnp.broadcast_to(b2_ref[...].astype(jnp.float32),
                                        acc_ref.shape)

    h = jnp.dot(x_ref[...], w1_ref[...], preferred_element_type=jnp.float32)
    h = _gelu_tanh(h + b1_ref[...].astype(jnp.float32))
    acc_ref[...] += jnp.dot(h.astype(w2_ref.dtype), w2_ref[...],
                            preferred_element_type=jnp.float32)

    @pl.when(h_step == pl.num_programs(1) - 1)
    def _finalize():
        o_ref[...] = acc_ref[...].astype(o_ref.dtype)


# ---------------------------------------------------------------------------
# Tiling helpers
# ---------------------------------------------------------------------------
def _pick_tile(dim, preferred, aligns):
    """Largest divisor of `dim` that is <= preferred and a multiple of one of
    `aligns` (tried in order); falls back to the full extent (always legal)."""
    if dim <= preferred:
        return dim
    for align in aligns:
        t = (preferred // align) * align
        while t >= align:
            if dim % t == 0:
                return t
            t -= align
    return dim


def _tpu_generation():
    try:
        kind = jax.devices()[0].device_kind.lower()
    except Exception:
        return None
    for tag, gen in (("7", "v7"), ("6", "v6"), ("5", "v5")):
        if tag in kind:
            return gen
    return None


def _tpu_vmem_capacity(default_bytes):
    try:
        info = pltpu.get_tpu_info()
        cap = int(getattr(info, "vmem_capacity_bytes", 0))
        if cap > 0:
            return cap
    except Exception:
        pass
    return default_bytes


_GEN_DEFAULTS = {
    # gen: (tn_pref, th_pref, th_aligns, fallback_vmem_bytes)
    "v7": (512, 256, (256, 128), 64 * 1024 * 1024),
    "v6": (1024, 512, (256, 128), 128 * 1024 * 1024),
    "v5": (512, 1024, (128,), 128 * 1024 * 1024),
    None: (512, 512, (256, 128), 64 * 1024 * 1024),   # conservative unknown
}


# ---------------------------------------------------------------------------
# Wrapper
# ---------------------------------------------------------------------------
def feedforward(x, w1, b1, w2, b2, *, tn_pref=None, th_pref=None,
                force_tiled=False):
    """x: (batch, seq, embed). w1: (E, 4E), b1: (4E,), w2: (4E, E), b2: (E,)."""
    B, S, E = x.shape
    E_in, H = w1.shape
    assert E_in == E and w2.shape == (H, E) and b1.shape == (H,) and b2.shape == (E,)
    N = B * S

    gen = _tpu_generation()
    g_tn, g_th, th_aligns, vmem_default = _GEN_DEFAULTS[gen]
    tn_pref = g_tn if tn_pref is None else tn_pref
    th_pref = g_th if th_pref is None else th_pref
    vmem_cap = _tpu_vmem_capacity(vmem_default)
    budget = int(vmem_cap * 0.7)

    dsize = jnp.dtype(x.dtype).itemsize
    tn_aligns = (16, 8) if dsize == 2 else (8,)
    base_align = tn_aligns[-1]

    x2d = x.reshape(N, E)
    b1_2d = b1.reshape(1, H)
    b2_2d = b2.reshape(1, E)

    # --- decide whether the full weight set can live in VMEM ----------------
    weights_bytes = (E * H + H * E + H + E) * dsize
    weights_buf = 2 * weights_bytes                       # conservative: 2 bufs/spec
    res_per_row = 4 * E * dsize + 2 * H * 4               # x/out dbuf + f32 GELU temps
    use_resident = (not force_tiled
                    and weights_buf <= budget // 2
                    and (budget - weights_buf) // res_per_row >= min(N, base_align))

    if use_resident:
        # ------------------- weight-resident path ---------------------------
        tn_cap = max(base_align, (budget - weights_buf) // res_per_row)
        TN = _pick_tile(N, min(tn_pref, tn_cap), tn_aligns)
        if N // TN < 2 and N >= 2 * base_align:            # >=2 tiles for megacore
            TN = _pick_tile(N, max(N // 2, base_align), tn_aligns)

        vmem_est = weights_buf + 4 * TN * E * dsize + 2 * TN * H * 4
        vmem_limit = int(min(max(int(vmem_est * 1.4), 32 * 1024 * 1024),
                             int(vmem_cap * 0.9)))

        out2d = pl.pallas_call(
            _ffn_resident_kernel,
            out_shape=jax.ShapeDtypeStruct((N, E), x.dtype),
            grid_spec=pltpu.PrefetchScalarGridSpec(
                num_scalar_prefetch=0,
                grid=(N // TN,),
                in_specs=[
                    pl.BlockSpec((TN, E), lambda i: (i, 0)),   # x: streamed
                    pl.BlockSpec((E, H), lambda i: (0, 0)),    # w1: resident
                    pl.BlockSpec((1, H), lambda i: (0, 0)),    # b1: resident
                    pl.BlockSpec((H, E), lambda i: (0, 0)),    # w2: resident
                    pl.BlockSpec((1, E), lambda i: (0, 0)),    # b2: resident
                ],
                out_specs=pl.BlockSpec((TN, E), lambda i: (i, 0)),
            ),
            compiler_params=pltpu.CompilerParams(
                dimension_semantics=("parallel",),
                vmem_limit_bytes=vmem_limit,
            ),
        )(x2d, w1, b1_2d, w2, b2_2d)
        return out2d.reshape(B, S, E)

    # ----------------------- tiled (reduction) path -------------------------
    TH = _pick_tile(H, th_pref, th_aligns)

    fixed = 2 * (E * TH + TH + TH * E + E) * dsize          # streamed weight bufs
    per_row = 4 * E * dsize + 4 * E + 8 * TH                # x/out dbuf + acc + temps
    tn_cap = max(base_align, (budget - fixed) // per_row)
    TN = _pick_tile(N, min(tn_pref, tn_cap), tn_aligns)
    if N // TN < 2 and N >= 2 * base_align:                  # >=2 tiles for megacore
        TN = _pick_tile(N, max(N // 2, base_align), tn_aligns)

    grid = (N // TN, H // TH)

    vmem_est = (2 * TN * E * dsize                # x double-buffer
                + 2 * (E * TH + TH + TH * E + E) * dsize   # w1/b1/w2/b2 buffers
                + 2 * TN * E * dsize              # output double-buffer
                + TN * E * 4                      # f32 accumulator scratch
                + 2 * TN * TH * 4)                # per-tile GELU intermediates
    vmem_limit = int(min(max(int(vmem_est * 1.4), 32 * 1024 * 1024),
                         int(vmem_cap * 0.9)))

    out2d = pl.pallas_call(
        _ffn_tiled_kernel,
        out_shape=jax.ShapeDtypeStruct((N, E), x.dtype),
        grid_spec=pltpu.PrefetchScalarGridSpec(
            num_scalar_prefetch=0,
            grid=grid,
            in_specs=[
                pl.BlockSpec((TN, E), lambda i, h: (i, 0)),   # x: resident over h
                pl.BlockSpec((E, TH), lambda i, h: (0, h)),   # w1: streamed over H
                pl.BlockSpec((1, TH), lambda i, h: (0, h)),   # b1: streamed over H
                pl.BlockSpec((TH, E), lambda i, h: (h, 0)),   # w2: streamed over H
                pl.BlockSpec((1, E), lambda i, h: (0, 0)),    # b2: resident
            ],
            out_specs=pl.BlockSpec((TN, E), lambda i, h: (i, 0)),
            scratch_shapes=[pltpu.VMEM((TN, E), jnp.float32)],
        ),
        compiler_params=pltpu.CompilerParams(
            dimension_semantics=("parallel", "arbitrary"),
            vmem_limit_bytes=vmem_limit,
        ),
    )(x2d, w1, b1_2d, w2, b2_2d)

    return out2d.reshape(B, S, E)


# ---------------------------------------------------------------------------
# Reference & tests
# ---------------------------------------------------------------------------
def _reference(x, w1, b1, w2, b2):
    h = jnp.einsum("bse,eh->bsh", x, w1) + b1
    h = 0.5 * h * (1.0 + jnp.tanh(_GELU_C * (h + 0.044715 * h ** 3)))
    return jnp.einsum("bsh,he->bse", h, w2) + b2


if __name__ == "__main__":
    # --- Test 1: small f32 shapes (the module's toy config: embed=32) -------
    batch, seq, embed = 2, 8, 32
    hidden = 4 * embed  # 128

    key = jax.random.PRNGKey(0)
    kx, kw1, kb1, kw2, kb2 = jax.random.split(key, 5)
    lim1 = 1.0 / math.sqrt(embed)
    lim2 = 1.0 / math.sqrt(hidden)
    x = jax.random.normal(kx, (batch, seq, embed), dtype=jnp.float32)
    w1 = jax.random.uniform(kw1, (embed, hidden), jnp.float32, -lim1, lim1)
    b1 = jax.random.uniform(kb1, (hidden,), jnp.float32, -lim1, lim1)
    w2 = jax.random.uniform(kw2, (hidden, embed), jnp.float32, -lim2, lim2)
    b2 = jax.random.uniform(kb2, (embed,), jnp.float32, -lim2, lim2)

    out = feedforward(x, w1, b1, w2, b2)
    jax.block_until_ready(out)
    ref = _reference(x, w1, b1, w2, b2)
    assert out.shape == (batch, seq, embed)
    assert jnp.allclose(out, ref, atol=1e-4, rtol=1e-4), "f32 mismatch vs reference"

    # --- Test 2: bf16 inputs; exercises BOTH the weight-resident fast path
    #     and the forced tiled path (multi-step hidden reduction, H=1024). ---
    batch2, seq2, embed2 = 2, 64, 256
    hidden2 = 4 * embed2  # 1024
    key2 = jax.random.PRNGKey(1)
    kx, kw1, kb1, kw2, kb2 = jax.random.split(key2, 5)
    l1 = 1.0 / math.sqrt(embed2)
    l2 = 1.0 / math.sqrt(hidden2)
    xb = jax.random.normal(kx, (batch2, seq2, embed2), jnp.float32).astype(jnp.bfloat16)
    w1b = jax.random.uniform(kw1, (embed2, hidden2), jnp.float32, -l1, l1).astype(jnp.bfloat16)
    b1b = jax.random.uniform(kb1, (hidden2,), jnp.float32, -l1, l1).astype(jnp.bfloat16)
    w2b = jax.random.uniform(kw2, (hidden2, embed2), jnp.float32, -l2, l2).astype(jnp.bfloat16)
    b2b = jax.random.uniform(kb2, (embed2,), jnp.float32, -l2, l2).astype(jnp.bfloat16)

    ref_bf16 = _reference(xb.astype(jnp.float32), w1b.astype(jnp.float32),
                          b1b.astype(jnp.float32), w2b.astype(jnp.float32),
                          b2b.astype(jnp.float32))

    out_fast = feedforward(xb, w1b, b1b, w2b, b2b)                      # resident path
    jax.block_until_ready(out_fast)
    out_tiled = feedforward(xb, w1b, b1b, w2b, b2b, force_tiled=True)   # tiled path
    jax.block_until_ready(out_tiled)

    for name, o in (("resident", out_fast), ("tiled", out_tiled)):
        assert o.shape == (batch2, seq2, embed2)
        max_err = float(jnp.max(jnp.abs(o.astype(jnp.float32) - ref_bf16)))
        assert max_err < 1e-1, f"bf16 {name} mismatch vs reference: {max_err}"

    print("KERNEL_OK")
</pallas_src>

<mosaic_0001>
module attributes {stable_mosaic.version = 11 : i64} {
  func.func @_ffn_resident_kernel(%arg0: i32, %arg1: memref<8x32xf32, #tpu.memory_space<vmem>>, %arg2: memref<32x128xf32, #tpu.memory_space<vmem>>, %arg3: memref<1x128xf32, #tpu.memory_space<vmem>>, %arg4: memref<128x32xf32, #tpu.memory_space<vmem>>, %arg5: memref<1x32xf32, #tpu.memory_space<vmem>>, %arg6: memref<8x32xf32, #tpu.memory_space<vmem>>) attributes {dimension_semantics = [#tpu.dimension_semantics<parallel>], iteration_bounds = array<i64: 2>, scalar_prefetch = 0 : i64, scratch_operands = 0 : i64, tpu.core_type = #tpu.core_type<tc>, window_params = [{transform_indices = @transform_0, window_bounds = array<i64: 8, 32>}, {pipeline_mode = #tpu.pipeline_mode<synchronous>, transform_indices = @transform_1, window_bounds = array<i64: 32, 128>}, {pipeline_mode = #tpu.pipeline_mode<synchronous>, transform_indices = @transform_2, window_bounds = array<i64: 1, 128>}, {pipeline_mode = #tpu.pipeline_mode<synchronous>, transform_indices = @transform_3, window_bounds = array<i64: 128, 32>}, {pipeline_mode = #tpu.pipeline_mode<synchronous>, transform_indices = @transform_4, window_bounds = array<i64: 1, 32>}, {transform_indices = @transform_5, window_bounds = array<i64: 8, 32>}]} {
    %c0 = arith.constant 0 : index
    %c0_0 = arith.constant 0 : index
    %0 = vector.load %arg1[%c0, %c0_0] : memref<8x32xf32, #tpu.memory_space<vmem>>, vector<8x32xf32>
    %c0_1 = arith.constant 0 : index
    %c0_2 = arith.constant 0 : index
    %1 = vector.load %arg2[%c0_1, %c0_2] : memref<32x128xf32, #tpu.memory_space<vmem>>, vector<32x128xf32>
    %cst = arith.constant dense<0.000000e+00> : vector<8x128xf32>
    %2 = tpu.matmul %0, %1, %cst {dimension_numbers = #tpu.dot_dimension_numbers<[1], [0], [0], [1], [0, 0, 1, 1], [], []>} : vector<8x32xf32>, vector<32x128xf32>, vector<8x128xf32> -> vector<8x128xf32>
    %c0_3 = arith.constant 0 : index
    %c0_4 = arith.constant 0 : index
    %3 = vector.load %arg3[%c0_3, %c0_4] : memref<1x128xf32, #tpu.memory_space<vmem>>, vector<1x128xf32>
    %4 = vector.broadcast %3 : vector<1x128xf32> to vector<8x128xf32>
    %5 = arith.addf %2, %4 : vector<8x128xf32>
    %cst_5 = arith.constant 0.797884583 : f32
    %6 = vector.broadcast %cst_5 : f32 to vector<8x128xf32>
    %7 = arith.mulf %6, %5 : vector<8x128xf32>
    %8 = arith.mulf %5, %5 : vector<8x128xf32>
    %cst_6 = arith.constant 4.471500e-02 : f32
    %9 = vector.broadcast %cst_6 : f32 to vector<8x128xf32>
    %10 = arith.mulf %9, %8 : vector<8x128xf32>
    %cst_7 = arith.constant 1.000000e+00 : f32
    %11 = vector.broadcast %cst_7 : f32 to vector<8x128xf32>
    %12 = arith.addf %11, %10 : vector<8x128xf32>
    %13 = arith.mulf %7, %12 : vector<8x128xf32>
    %14 = math.tanh %13 : vector<8x128xf32>
    %cst_8 = arith.constant 5.000000e-01 : f32
    %15 = vector.broadcast %cst_8 : f32 to vector<8x128xf32>
    %16 = arith.mulf %15, %14 : vector<8x128xf32>
    %cst_9 = arith.constant 5.000000e-01 : f32
    %17 = vector.broadcast %cst_9 : f32 to vector<8x128xf32>
    %18 = arith.addf %17, %16 : vector<8x128xf32>
    %19 = arith.mulf %5, %18 : vector<8x128xf32>
    %c0_10 = arith.constant 0 : index
    %c0_11 = arith.constant 0 : index
    %20 = vector.load %arg4[%c0_10, %c0_11] : memref<128x32xf32, #tpu.memory_space<vmem>>, vector<128x32xf32>
    %cst_12 = arith.constant dense<0.000000e+00> : vector<8x32xf32>
    %21 = tpu.matmul %19, %20, %cst_12 {dimension_numbers = #tpu.dot_dimension_numbers<[1], [0], [0], [1], [0, 0, 1, 1], [], []>} : vector<8x128xf32>, vector<128x32xf32>, vector<8x32xf32> -> vector<8x32xf32>
    %c0_13 = arith.constant 0 : index
    %c0_14 = arith.constant 0 : index
    %22 = vector.load %arg5[%c0_13, %c0_14] : memref<1x32xf32, #tpu.memory_space<vmem>>, vector<1x32xf32>
    %23 = vector.broadcast %22 : vector<1x32xf32> to vector<8x32xf32>
    %24 = arith.addf %21, %23 : vector<8x32xf32>
    %c0_15 = arith.constant 0 : index
    %c0_16 = arith.constant 0 : index
    %25 = vector.load %arg6[%c0_15, %c0_16] : memref<8x32xf32, #tpu.memory_space<vmem>>, vector<8x32xf32>
    tpu.vector_store %arg6[%c0_15, %c0_16], %24 {strides = array<i32>} : memref<8x32xf32, #tpu.memory_space<vmem>>, vector<8x32xf32>,
    return
  }
  func.func @transform_0(%arg0: i32) -> (i32, i32) {
    %c0_i32 = arith.constant 0 : i32
    %c0_i32_0 = arith.constant 0 : i32
    return %arg0, %c0_i32 : i32, i32
  }
  func.func @transform_1(%arg0: i32) -> (i32, i32) {
    %c0_i32 = arith.constant 0 : i32
    %c0_i32_0 = arith.constant 0 : i32
    %c0_i32_1 = arith.constant 0 : i32
    return %c0_i32, %c0_i32_0 : i32, i32
  }
  func.func @transform_2(%arg0: i32) -> (i32, i32) {
    %c0_i32 = arith.constant 0 : i32
    %c0_i32_0 = arith.constant 0 : i32
    %c0_i32_1 = arith.constant 0 : i32
    return %c0_i32, %c0_i32_0 : i32, i32
  }
  func.func @transform_3(%arg0: i32) -> (i32, i32) {
    %c0_i32 = arith.constant 0 : i32
    %c0_i32_0 = arith.constant 0 : i32
    %c0_i32_1 = arith.constant 0 : i32
    return %c0_i32, %c0_i32_0 : i32, i32
  }
  func.func @transform_4(%arg0: i32) -> (i32, i32) {
    %c0_i32 = arith.constant 0 : i32
    %c0_i32_0 = arith.constant 0 : i32
    %c0_i32_1 = arith.constant 0 : i32
    return %c0_i32, %c0_i32_0 : i32, i32
  }
  func.func @transform_5(%arg0: i32) -> (i32, i32) {
    %c0_i32 = arith.constant 0 : i32
    %c0_i32_0 = arith.constant 0 : i32
    return %arg0, %c0_i32 : i32, i32
  }
}

</mosaic_0001>

<llo_original>
// kernel: tpu_custom_call.1
$region0: #{tpu_custom_call.1}
  #allocation0 [shape = 'u32[]', space=smem, size = 0x4, offset = 0x4, fixed_abs, tag = 'smem constant byte address 0x4 - core index']
  #allocation1 [shape = 'u32[72,128]{1,0:T(1,128)}', space=vmem, size = 0x9000, scoped, tag = 'internal scratch']
  %s0 = inlined_call_operand.vmem [shape: f32[16,32], index: 0, kind: input, shape index: {}]
  %s1 = inlined_call_operand.vmem [shape: f32[32,128], index: 1, kind: input, shape index: {}]
  %s2 = inlined_call_operand.vmem [shape: f32[1,128], index: 2, kind: input, shape index: {}]
  %s3 = inlined_call_operand.vmem [shape: f32[128,32], index: 3, kind: input, shape index: {}]
  %s4 = inlined_call_operand.vmem [shape: f32[1,32], index: 4, kind: input, shape index: {}]
  %s5 = inlined_call_operand.hbm [shape: f32[16,32], index: 5, kind: output, shape index: {}]
  %s6 = sld [smem:[#allocation0]]
  $region53: #{tpu_custom_call.1} parent=0
    _
  %s8 = ssub.s32 1, %s6
  %s9 = scalar_select 0, %s8, %s6
  $region1: #{tpu_custom_call.1} parent=0
    #allocation2 [shape = 'u8[8192]{0}', space=vmem, size = 0x2000, scoped, tag = 'output window, operand 0']
    #allocation3 [shape = 's32[2]{0}', space=sflag, size = 0x8, scoped, tag = 'scoped memory for tpu_custom_call.1']
    %10 = vsyncpa [#allocation3], 0
    %s11 = scalar_lea.sflag [#allocation3], 1
    %12 = vsyncpa %s11, 0
    loop: start=0, step=1, limit=4
    $region2: #{tpu_custom_call.1} parent=1 // loop_pre_header
      _
    $region3: #{tpu_custom_call.1} parent=1 // loop_header
      %s14 = sphi 0, %s18
      %p15 = scmp.ge.s32.totalorder %s14, 4
      %s24 = sphi 0, %s26
      %s27 = sphi 0, %s24
      %s28 = sphi 0, %s27
      %s44 = sphi 0, %s28
      %s48 = sphi 0, %s48
      %s50 = sphi 0, %s48
      %s51 = sphi 0, %s50
      %s65 = sphi 0, %s51
      %s69 = sphi 0, %s69
      %s71 = sphi 0, %s69
      %s72 = sphi 0, %s71
      %s86 = sphi 0, %s72
      %s90 = sphi 0, %s90
      %s92 = sphi 0, %s90
      %s93 = sphi 0, %s92
      %s107 = sphi 0, %s93
      %s111 = sphi 0, %s111
      %s113 = sphi 0, %s111
      %s114 = sphi 0, %s113
      %s128 = sphi 0, %s114
      %s134 = sphi 0, %s136
      %s137 = sphi 0, %s134
      %s138 = sphi 0, %s137
      %s154 = sphi 0, %s138
    $region4: #{tpu_custom_call.1} parent=1 // loop_header_branch
      %17 = sbr.rel (%p15) target = $region8
    $region5: #{tpu_custom_call.1} parent=1 // loop_body
      %s19 = ssub.s32 %s14, 1
      %s20 = ssub.s32 %s14, 2
      %s21 = sadd.s32 %s14, 1
      %s22 = ssub.s32 %s14, %s21
      %p23 = scmp.eq.s32.totalorder %s22, 0
      %s25 = sadd.s32 %s24, 1
      %s26 = scalar_select %p23, %s24, %s25
      %p29 = pneg %p23
      %p30 = scmp.eq.s32.totalorder %s14, 1
      %p31 = por %p29, %p30
      %p32 = scmp.ne.s32.totalorder %s24, %s27
      %p33 = scmp.eq.s32.totalorder %s14, 0
      %p34 = por %p32, %p33
      %p35 = scmp.ne.s32.totalorder %s24, %s27
      %p36 = scmp.eq.s32.totalorder %s19, 1
      %p37 = por %p35, %p36
      %p38 = scmp.ne.s32.totalorder %s27, %s28
      %p39 = scmp.eq.s32.totalorder %s19, 0
      %p40 = por %p38, %p39
      %p41 = scmp.ne.s32.totalorder %s27, %s28
      %p42 = scmp.eq.s32.totalorder %s20, 1
      %p43 = por %p41, %p42
      %p45 = scmp.ne.s32.totalorder %s28, %s44
      %p46 = scmp.eq.s32.totalorder %s20, 0
      %p47 = por %p45, %p46
      %s49 = sadd.s32 %s48, 1
      %p52 = scmp.eq.s32.totalorder %s14, 1
      %p53 = scmp.ne.s32.totalorder %s48, %s50
      %p54 = scmp.eq.s32.totalorder %s14, 0
      %p55 = por %p53, %p54
      %p56 = scmp.ne.s32.totalorder %s48, %s50
      %p57 = scmp.eq.s32.totalorder %s19, 1
      %p58 = por %p56, %p57
      %p59 = scmp.ne.s32.totalorder %s50, %s51
      %p60 = scmp.eq.s32.totalorder %s19, 0
      %p61 = por %p59, %p60
      %p62 = scmp.ne.s32.totalorder %s50, %s51
      %p63 = scmp.eq.s32.totalorder %s20, 1
      %p64 = por %p62, %p63
      %p66 = scmp.ne.s32.totalorder %s51, %s65
      %p67 = scmp.eq.s32.totalorder %s20, 0
      %p68 = por %p66, %p67
      %s70 = sadd.s32 %s69, 1
      %p73 = scmp.eq.s32.totalorder %s14, 1
      %p74 = scmp.ne.s32.totalorder %s69, %s71
      %p75 = scmp.eq.s32.totalorder %s14, 0
      %p76 = por %p74, %p75
      %p77 = scmp.ne.s32.totalorder %s69, %s71
      %p78 = scmp.eq.s32.totalorder %s19, 1
      %p79 = por %p77, %p78
      %p80 = scmp.ne.s32.totalorder %s71, %s72
      %p81 = scmp.eq.s32.totalorder %s19, 0
      %p82 = por %p80, %p81
      %p83 = scmp.ne.s32.totalorder %s71, %s72
      %p84 = scmp.eq.s32.totalorder %s20, 1
      %p85 = por %p83, %p84
      %p87 = scmp.ne.s32.totalorder %s72, %s86
      %p88 = scmp.eq.s32.totalorder %s20, 0
      %p89 = por %p87, %p88
      %s91 = sadd.s32 %s90, 1
      %p94 = scmp.eq.s32.totalorder %s14, 1
      %p95 = scmp.ne.s32.totalorder %s90, %s92
      %p96 = scmp.eq.s32.totalorder %s14, 0
      %p97 = por %p95, %p96
      %p98 = scmp.ne.s32.totalorder %s90, %s92
      %p99 = scmp.eq.s32.totalorder %s19, 1
      %p100 = por %p98, %p99
      %p101 = scmp.ne.s32.totalorder %s92, %s93
      %p102 = scmp.eq.s32.totalorder %s19, 0
      %p103 = por %p101, %p102
      %p104 = scmp.ne.s32.totalorder %s92, %s93
      %p105 = scmp.eq.s32.totalorder %s20, 1
      %p106 = por %p104, %p105
      %p108 = scmp.ne.s32.totalorder %s93, %s107
      %p109 = scmp.eq.s32.totalorder %s20, 0
      %p110 = por %p108, %p109
      %s112 = sadd.s32 %s111, 1
      %p115 = scmp.eq.s32.totalorder %s14, 1
      %p116 = scmp.ne.s32.totalorder %s111, %s113
      %p117 = scmp.eq.s32.totalorder %s14, 0
      %p118 = por %p116, %p117
      %p119 = scmp.ne.s32.totalorder %s111, %s113
      %p120 = scmp.eq.s32.totalorder %s19, 1
      %p121 = por %p119, %p120
      %p122 = scmp.ne.s32.totalorder %s113, %s114
      %p123 = scmp.eq.s32.totalorder %s19, 0
      %p124 = por %p122, %p123
      %p125 = scmp.ne.s32.totalorder %s113, %s114
      %p126 = scmp.eq.s32.totalorder %s20, 1
      %p127 = por %p125, %p126
      %p129 = scmp.ne.s32.totalorder %s114, %s128
      %p130 = scmp.eq.s32.totalorder %s20, 0
      %p131 = por %p129, %p130
      %s132 = ssub.s32 %s14, %s21
      %p133 = scmp.eq.s32.totalorder %s132, 0
      %s135 = sadd.s32 %s134, 1
      %s136 = scalar_select %p133, %s134, %s135
      %p139 = pneg %p133
      %p140 = scmp.eq.s32.totalorder %s14, 1
      %p141 = por %p139, %p140
      %p142 = scmp.ne.s32.totalorder %s134, %s137
      %p143 = scmp.eq.s32.totalorder %s14, 0
      %p144 = por %p142, %p143
      %p145 = scmp.ne.s32.totalorder %s134, %s137
      %p146 = scmp.eq.s32.totalorder %s19, 1
      %p147 = por %p145, %p146
      %p148 = scmp.ne.s32.totalorder %s137, %s138
      %p149 = scmp.eq.s32.totalorder %s19, 0
      %p150 = por %p148, %p149
      %p151 = scmp.ne.s32.totalorder %s137, %s138
      %p152 = scmp.eq.s32.totalorder %s20, 1
      %p153 = por %p151, %p152
      %p155 = scmp.ne.s32.totalorder %s138, %s154
      %p156 = scmp.eq.s32.totalorder %s20, 0
      %p157 = por %p155, %p156
      %p158 = scmp.le.s32.totalorder 1, %s14
      %p159 = scmp.lt.s32.totalorder %s14, 3
      %p160 = pnand %p158, %p159
      %p161 = pneg %p160
      // Predicated region
      $region9: #{tpu_custom_call.1} parent=5 // pred_check
        _
      $region10: #{tpu_custom_call.1} parent=5 // pred_check_branch
        %163 = sbr.rel (%p160) target = $region12
      $region11: #{tpu_custom_call.1} parent=5 // pred_region
        %s164 = ssub.s32 %s14, 1
        // Predicated region
        $region13: #{tpu_custom_call.1} parent=11 // pred_check
          %p165 = pneg %p61
        $region14: #{tpu_custom_call.1} parent=11 // pred_check_branch
          %167 = sbr.rel (%p165) target = $region16
        $region15: #{tpu_custom_call.1} parent=11 // pred_region
          _
        $region16: #{tpu_custom_call.1} parent=11 // pred_fallthru
          _
        // Predicated region
        $region17: #{tpu_custom_call.1} parent=11 // pred_check
          %p168 = pneg %p82
        $region18: #{tpu_custom_call.1} parent=11 // pred_check_branch
          %170 = sbr.rel (%p168) target = $region20
        $region19: #{tpu_custom_call.1} parent=11 // pred_region
          _
        $region20: #{tpu_custom_call.1} parent=11 // pred_fallthru
          _
        // Predicated region
        $region21: #{tpu_custom_call.1} parent=11 // pred_check
          %p171 = pneg %p103
        $region22: #{tpu_custom_call.1} parent=11 // pred_check_branch
          %173 = sbr.rel (%p171) target = $region24
        $region23: #{tpu_custom_call.1} parent=11 // pred_region
          _
        $region24: #{tpu_custom_call.1} parent=11 // pred_fallthru
          _
        // Predicated region
        $region25: #{tpu_custom_call.1} parent=11 // pred_check
          %p174 = pneg %p124
        $region26: #{tpu_custom_call.1} parent=11 // pred_check_branch
          %176 = sbr.rel (%p174) target = $region28
        $region27: #{tpu_custom_call.1} parent=11 // pred_region
          _
        $region28: #{tpu_custom_call.1} parent=11 // pred_fallthru
          _
      $region12: #{tpu_custom_call.1} parent=5 // pred_fallthru
        _
      %p177 = scmp.lt.s32.totalorder %s14, 2
      // Predicated region
      $region29: #{tpu_custom_call.1} parent=5 // pred_check
        %p178 = pneg %p177
      $region30: #{tpu_custom_call.1} parent=5 // pred_check_branch
        %180 = sbr.rel (%p178) target = $region32
      $region31: #{tpu_custom_call.1} parent=5 // pred_region
        // Predicated region
        $region33: #{tpu_custom_call.1} parent=31 // pred_check
          %p181 = pneg %p34
        $region34: #{tpu_custom_call.1} parent=31 // pred_check_branch
          %183 = sbr.rel (%p181) target = $region36
        $region35: #{tpu_custom_call.1} parent=31 // pred_region
          %p184 = scmp.lt.s32.totalorder %s14, 1
          %s185 = scalar_select %p184, %s14, 1
          %s186 = smul.addr %s185, 8
          %s187 = scalar_lea.vmem %s0, %s186
        $region36: #{tpu_custom_call.1} parent=31 // pred_fallthru
          _
      $region32: #{tpu_custom_call.1} parent=5 // pred_fallthru
        _
      %p188 = scmp.le.s32.totalorder 1, %s14
      %p189 = scmp.lt.s32.totalorder %s14, 3
      %p190 = pnand %p188, %p189
      %p191 = pneg %p190
      // Predicated region
      $region37: #{tpu_custom_call.1} parent=5 // pred_check
        _
      $region38: #{tpu_custom_call.1} parent=5 // pred_check_branch
        %193 = sbr.rel (%p190) target = $region40
      $region39: #{tpu_custom_call.1} parent=5 // pred_region
        %s194 = ssub.s32 %s14, 1
        %p195 = scmp.lt.s32.totalorder %s19, 1
        %s196 = scalar_select %p195, %s19, 1
        %s197 = smul.addr %s196, 8
        %s198 = scalar_lea.vmem %s0, %s197
        %p199 = pneg %p40
        %p200 = pneg %p37
        %p201 = pneg %p61
        %p202 = pneg %p58
        %p203 = pneg %p82
        %p204 = pneg %p79
        %p205 = pneg %p103
        %p206 = pneg %p100
        %p207 = pneg %p124
        %p208 = pneg %p121
        %p209 = pneg %p150
        %p210 = pneg %p147
        %s211 = sand.u32 %s137, 1
        %s212 = scalar_lea.sflag [#allocation3], %s211
        %s213 = sand.u32 %s137, 1
        %s214 = smul.addr %s213, 8
        %s215 = scalar_lea.vmem [#allocation2], %s214
        %p216 = scmp.lt.s32.totalorder %s19, 1
        %s217 = scalar_select %p216, %s19, 1
        %s218 = smul.addr %s217, 8
        %s219 = scalar_lea.vmem %s0, %s218
        %v220 = vld [vmem:[%s219] sm:$0xff]
        %v221 = vld [vmem:[%s1] sm:$0xff]
        %v222 = vld [vmem:[%s1 + $0x8] sm:$0xff]
        %v223 = vld [vmem:[%s1 + $0x10] sm:$0xff]
        %v224 = vld [vmem:[%s1 + $0x18] sm:$0xff]
        %v225 = vld [vmem:[%s2] sm:$0x1]
        %v227 = vperm.slane %v225, 0
        %vm229 = vcmask 261120
        %v231 = vsel %vm229, %v220, 0
        %233 = vmatpush.msra.mxu0 0.0
        %234 = vmatpush.msra.mxu0 0.0
        %235 = vmatpush.msra.mxu0 0.0
        %236 = vmatpush.msra.mxu0 0.0
        %237 = vmatpush.msra.mxu0 0.0
        %238 = vmatpush.msra.mxu0 0.0
        %239 = vmatpush.msra.mxu0 0.0
        %240 = vmatpush.msra.mxu0 0.0
        %241 = vmatpush.msra.mxu0 0.0
        %242 = vmatpush.msra.mxu0 0.0
        %243 = vmatpush.msra.mxu0 0.0
        %244 = vmatpush.msra.mxu0 0.0
        %245 = vmatpush.msra.mxu0 %v224
        %246 = vmatpush.msra.mxu0 %v223
        %247 = vmatpush.msra.mxu0 %v222
        %248 = vmatpush.msra.mxu0 %v221
        %249 = vmatmul.f32.gmra.mxu0 %v231
        %v250 = vpop.f32.mrf.mxu0
        %v251 = vadd.f32 %v227, %v250
        %252 = vdwg.mxu0
        %v253 = vmul.f32 %v251, 0.7978846
        %v254 = vmul.f32 %v251, %v251
        %v255 = vmul.f32 %v254, 0.044715
        %v256 = vadd.f32 %v255, 1.0
        %v257 = vmul.f32 %v253, %v256
        %v258 = vtanh.pop %v257
        %v259 = vmul.f32 %v258, 0.5
        %v260 = vadd.f32 %v259, 0.5
        %v261 = vmul.f32 %v251, %v260
        %v262 = vld [vmem:[%s3] sm:$0xff]
        %v263 = vld [vmem:[%s3 + $0x8] sm:$0xff]
        %v264 = vld [vmem:[%s3 + $0x10] sm:$0xff]
        %v265 = vld [vmem:[%s3 + $0x18] sm:$0xff]
        %v266 = vld [vmem:[%s3 + $0x20] sm:$0xff]
        %v267 = vld [vmem:[%s3 + $0x28] sm:$0xff]
        %v268 = vld [vmem:[%s3 + $0x30] sm:$0xff]
        %v269 = vld [vmem:[%s3 + $0x38] sm:$0xff]
        %v270 = vld [vmem:[%s3 + $0x40] sm:$0xff]
        %v271 = vld [vmem:[%s3 + $0x48] sm:$0xff]
        %v272 = vld [vmem:[%s3 + $0x50] sm:$0xff]
        %v273 = vld [vmem:[%s3 + $0x58] sm:$0xff]
        %v274 = vld [vmem:[%s3 + $0x60] sm:$0xff]
        %v275 = vld [vmem:[%s3 + $0x68] sm:$0xff]
        %v276 = vld [vmem:[%s3 + $0x70] sm:$0xff]
        %v277 = vld [vmem:[%s3 + $0x78] sm:$0xff]
        %v278 = vld [vmem:[%s4] sm:$0x1]
        %v280 = vperm.slane %v278, 0
        %282 = vmatpush.msra.mxu0 %v277
        %283 = vmatpush.msra.mxu0 %v276
        %284 = vmatpush.msra.mxu0 %v275
        %285 = vmatpush.msra.mxu0 %v274
        %286 = vmatpush.msra.mxu0 %v273
        %287 = vmatpush.msra.mxu0 %v272
        %288 = vmatpush.msra.mxu0 %v271
        %289 = vmatpush.msra.mxu0 %v270
        %290 = vmatpush.msra.mxu0 %v269
        %291 = vmatpush.msra.mxu0 %v268
        %292 = vmatpush.msra.mxu0 %v267
        %293 = vmatpush.msra.mxu0 %v266
        %294 = vmatpush.msra.mxu0 %v265
        %295 = vmatpush.msra.mxu0 %v264
        %296 = vmatpush.msra.mxu0 %v263
        %297 = vmatpush.msra.mxu0 %v262
        %298 = vmatmul.f32.gmra.mxu0 %v261
        %v299 = vpop.f32.mrf.mxu0
        %v300 = vadd.f32 %v280, %v299
        %301 = vdwg.mxu0
        %302 = vst.msk [vmem:[%s215] sm:$0xff] %vm229, %v300
        %s303 = sand.u32 %s137, 1
        %s304 = scalar_lea.sflag [#allocation3], %s303
        %s305 = sand.u32 %s137, 1
        %s306 = smul.addr %s305, 8
        %s307 = scalar_lea.vmem [#allocation2], %s306
        // Predicated region
        $region41: #{tpu_custom_call.1} parent=39 // pred_check
          %p308 = pneg %p147
        $region42: #{tpu_custom_call.1} parent=39 // pred_check_branch
          %310 = sbr.rel (%p308) target = $region44
        $region43: #{tpu_custom_call.1} parent=39 // pred_region
          %312 = vsyncadd %s304, 0
          %s313 = smul.addr %s19, 8
          %s314 = scalar_lea.hbm %s5, %s313
          %s316 = sshll.u32 %s307, 4
          %s317 = int_to_ptr.vmem [resolvable:$true] %s316
          %s318 = sshll.u32 %s314, 4
          %s319 = int_to_ptr.hbm [resolvable:$true] %s318
          %321 = dma.vmem_to_hbm [thread:$0]  %s317, 128, %s319, %s304
        $region44: #{tpu_custom_call.1} parent=39 // pred_fallthru
          _
      $region40: #{tpu_custom_call.1} parent=5 // pred_fallthru
        _
      %p322 = scmp.le.s32.totalorder 2, %s14
      // Predicated region
      $region45: #{tpu_custom_call.1} parent=5 // pred_check
        %p323 = pneg %p322
      $region46: #{tpu_custom_call.1} parent=5 // pred_check_branch
        %325 = sbr.rel (%p323) target = $region48
      $region47: #{tpu_custom_call.1} parent=5 // pred_region
        %s326 = ssub.s32 %s14, 2
        // Predicated region
        $region49: #{tpu_custom_call.1} parent=47 // pred_check
          %p327 = pneg %p153
        $region50: #{tpu_custom_call.1} parent=47 // pred_check_branch
          %329 = sbr.rel (%p327) target = $region52
        $region51: #{tpu_custom_call.1} parent=47 // pred_region
          %s330 = sand.u32 %s138, 1
          %s331 = scalar_lea.sflag [#allocation3], %s330
          %s332 = sand.u32 %s138, 1
          %s333 = smul.addr %s332, 8
          %s334 = scalar_lea.vmem [#allocation2], %s333
          %336 = dma.done %s331, 128
        $region52: #{tpu_custom_call.1} parent=47 // pred_fallthru
          _
      $region48: #{tpu_custom_call.1} parent=5 // pred_fallthru
        _
    $region6: #{tpu_custom_call.1} parent=1 // loop_footer
      %s18 = sadd.s32 1, %s14
    $region7: #{tpu_custom_call.1} parent=1 // loop_footer_branch
      %13 = sbr.rel target = $region3
    $region8: #{tpu_custom_call.1} parent=1 // loop_exit
      _
    %337 = vsyncpa [#allocation3], 1
    %s338 = scalar_lea.sflag [#allocation3], 1
    %339 = vsyncpa %s338, 1

</llo_original>
